<compile_context>
chip_gen: v7x
topology: tpu7x:2x2x1
jax: 0.10.0
libtpu: 0.0.40
codegen_flags: <defaults>
</compile_context>

<pallas_src>
import functools

import jax
import jax.numpy as jnp
from jax.experimental import pallas as pl
from jax.experimental.pallas import tpu as pltpu


def _round_up(x, m):
    return ((x + m - 1) // m) * m


def _kldiv_logsm_kernel(x_ref, t_ref, o_ref, *, n_rows, inv_n, tb, needs_mask):
    """One (TB, C) batch tile; accumulates the global sum into o_ref (1,1)."""
    i = pl.program_id(0)

    @pl.when(i == 0)
    def _init():
        o_ref[...] = jnp.zeros_like(o_ref)

    x = x_ref[...].astype(jnp.float32)
    t = t_ref[...].astype(jnp.float32)

    # Numerically stable log_softmax over the class (lane) axis.
    m = jnp.max(x, axis=1, keepdims=True)
    s = x - m
    lse = jnp.log(jnp.sum(jnp.exp(s), axis=1, keepdims=True))
    log_probs = s - lse

    # KLDivLoss pointwise: t * (log t - log_probs), xlogy semantics at t == 0.
    # t * log_probs is already 0 where t == 0 (log_probs finite), so only one
    # select is needed for the t*log(t) term.
    t_log_t = jnp.where(t > 0, t * jnp.log(jnp.where(t > 0, t, 1.0)), 0.0)
    pointwise = t_log_t - t * log_probs

    # Lane reduce first -> (TB, 1); mask padded rows of a ragged tail tile.
    row_sum = jnp.sum(pointwise, axis=1, keepdims=True)
    if needs_mask:
        row_ids = i * tb + jax.lax.broadcasted_iota(jnp.int32, (tb, 1), 0)
        row_sum = jnp.where(row_ids < n_rows, row_sum, 0.0)

    # Accumulate into the resident (1,1) output block.
    o_ref[...] += jnp.sum(row_sum, axis=0, keepdims=True)

    @pl.when(i == pl.num_programs(0) - 1)
    def _finalize():
        # reduction='mean' in torch.nn.KLDivLoss -> mean over ALL elements.
        o_ref[...] = o_ref[...] * inv_n


def kldiv_with_log_softmax(inputs, targets, *, block_rows=None,
                           target_tile_bytes=3 << 20):
    """Pallas TPU implementation of KLDivWithLogSM.forward.

    inputs : (B, C) logits (pre-softmax), f32 or bf16
    targets: (B, C) target probability distribution
    returns: scalar f32 loss (mean over all B*C elements)
    """
    assert inputs.shape == targets.shape and inputs.ndim == 2
    B, C = inputs.shape

    if block_rows is None:
        itemsize = jnp.dtype(inputs.dtype).itemsize
        rows_fit = max(1, target_tile_bytes // max(1, C * itemsize))
        tb = max(8, (rows_fit // 8) * 8)
        tb = min(tb, 1024)
    else:
        tb = max(8, (int(block_rows) // 8) * 8)
    # Never use a tile taller than the (sublane-rounded) problem.
    tb = min(tb, _round_up(B, 8))

    grid = pl.cdiv(B, tb)
    inv_n = 1.0 / float(B * C)
    needs_mask = (B % tb) != 0

    kernel = functools.partial(
        _kldiv_logsm_kernel, n_rows=B, inv_n=inv_n, tb=tb, needs_mask=needs_mask)

    out = pl.pallas_call(
        kernel,
        out_shape=jax.ShapeDtypeStruct((1, 1), jnp.float32),
        grid_spec=pltpu.PrefetchScalarGridSpec(
            num_scalar_prefetch=0,
            grid=(grid,),
            in_specs=[
                pl.BlockSpec((tb, C), lambda i: (i, 0)),
                pl.BlockSpec((tb, C), lambda i: (i, 0)),
            ],
            out_specs=pl.BlockSpec((1, 1), lambda i: (0, 0)),
        ),
        compiler_params=pltpu.CompilerParams(
            # Single grid axis is a reduction into a shared accumulator.
            dimension_semantics=("arbitrary",),
        ),
    )(inputs, targets)
    return out[0, 0]


def _reference(inputs, targets):
    x = inputs.astype(jnp.float32)
    t = targets.astype(jnp.float32)
    log_probs = jax.nn.log_softmax(x, axis=1)
    pw = jnp.where(t > 0, t * jnp.log(jnp.where(t > 0, t, 1.0)), 0.0) - t * log_probs
    return jnp.mean(pw)


if __name__ == "__main__":
    key = jax.random.PRNGKey(0)
    k1, k2, k3, k4 = jax.random.split(key, 4)

    # Test 1: ragged batch (B not a multiple of the tile) + multi-step grid.
    B, C = 30, 160
    inputs = jax.random.normal(k1, (B, C), dtype=jnp.float32)
    targets = jax.nn.softmax(jax.random.normal(k2, (B, C), dtype=jnp.float32), axis=1)
    loss = kldiv_with_log_softmax(inputs, targets, block_rows=8)  # grid = 4 tiles
    jax.block_until_ready(loss)
    ref = _reference(inputs, targets)
    assert jnp.allclose(loss, ref, atol=1e-5, rtol=1e-4), (loss, ref)

    # Test 2: default (auto) tiling, bf16 inputs kept in bf16 in HBM.
    B2, C2 = 16, 128
    x2 = jax.random.normal(k3, (B2, C2), dtype=jnp.float32).astype(jnp.bfloat16)
    t2 = jax.nn.softmax(jax.random.normal(k4, (B2, C2), dtype=jnp.float32),
                        axis=1).astype(jnp.bfloat16)
    loss2 = kldiv_with_log_softmax(x2, t2)
    jax.block_until_ready(loss2)
    ref2 = _reference(x2, t2)
    assert jnp.allclose(loss2, ref2, atol=1e-5, rtol=1e-4), (loss2, ref2)

    print("KERNEL_OK")
</pallas_src>

<mosaic_0001>
module attributes {stable_mosaic.version = 11 : i64} {
  func.func @_kldiv_logsm_kernel(%arg0: i32, %arg1: memref<8x160xf32, #tpu.memory_space<vmem>>, %arg2: memref<8x160xf32, #tpu.memory_space<vmem>>, %arg3: memref<1x1xf32, #tpu.memory_space<vmem>>) attributes {dimension_semantics = [#tpu.dimension_semantics<arbitrary>], iteration_bounds = array<i64: 4>, scalar_prefetch = 0 : i64, scratch_operands = 0 : i64, tpu.core_type = #tpu.core_type<tc>, window_params = [{transform_indices = @transform_0, window_bounds = array<i64: 8, 160>}, {transform_indices = @transform_1, window_bounds = array<i64: 8, 160>}, {pipeline_mode = #tpu.pipeline_mode<synchronous>, transform_indices = @transform_2, window_bounds = array<i64: 1, 1>}]} {
    %c0_i32 = arith.constant 0 : i32
    %0 = arith.cmpi eq, %arg0, %c0_i32 : i32
    %1 = arith.extui %0 : i1 to i32
    %c0_i32_0 = arith.constant 0 : i32
    %2 = arith.cmpi ne, %1, %c0_i32_0 : i32
    scf.if %2 {
      %cst_17 = arith.constant 0.000000e+00 : f32
      %45 = vector.broadcast %cst_17 : f32 to vector<1x1xf32>
      %c0_18 = arith.constant 0 : index
      %c0_19 = arith.constant 0 : index
      %46 = vector.load %arg3[%c0_18, %c0_19] : memref<1x1xf32, #tpu.memory_space<vmem>>, vector<1x1xf32>
      tpu.vector_store %arg3[%c0_18, %c0_19], %45 {strides = array<i32>} : memref<1x1xf32, #tpu.memory_space<vmem>>, vector<1x1xf32>,
    } else {
    }
    %c0 = arith.constant 0 : index
    %c0_1 = arith.constant 0 : index
    %3 = vector.load %arg1[%c0, %c0_1] : memref<8x160xf32, #tpu.memory_space<vmem>>, vector<8x160xf32>
    %c0_2 = arith.constant 0 : index
    %c0_3 = arith.constant 0 : index
    %4 = vector.load %arg2[%c0_2, %c0_3] : memref<8x160xf32, #tpu.memory_space<vmem>>, vector<8x160xf32>
    %cst = arith.constant dense<0xFF800000> : vector<8xf32>
    %5 = vector.multi_reduction <maximumf>, %3, %cst [1] : vector<8x160xf32> to vector<8xf32>
    %6 = vector.shape_cast %5 : vector<8xf32> to vector<8x1xf32>
    %7 = vector.broadcast %6 : vector<8x1xf32> to vector<8x160xf32>
    %8 = arith.subf %3, %7 : vector<8x160xf32>
    %9 = math.exp %8 : vector<8x160xf32>
    %cst_4 = arith.constant dense<0.000000e+00> : vector<8xf32>
    %10 = vector.multi_reduction <add>, %9, %cst_4 [1] : vector<8x160xf32> to vector<8xf32>
    %11 = vector.shape_cast %10 : vector<8xf32> to vector<8x1xf32>
    %12 = math.log %11 : vector<8x1xf32>
    %13 = vector.broadcast %12 : vector<8x1xf32> to vector<8x160xf32>
    %14 = arith.subf %8, %13 : vector<8x160xf32>
    %cst_5 = arith.constant 0.000000e+00 : f32
    %15 = vector.broadcast %cst_5 : f32 to vector<8x160xf32>
    %16 = arith.cmpf ogt, %4, %15 : vector<8x160xf32>
    %cst_6 = arith.constant 0.000000e+00 : f32
    %17 = vector.broadcast %cst_6 : f32 to vector<8x160xf32>
    %18 = arith.cmpf ogt, %4, %17 : vector<8x160xf32>
    %cst_7 = arith.constant 1.000000e+00 : f32
    %19 = vector.broadcast %cst_7 : f32 to vector<8x160xf32>
    %20 = arith.select %18, %4, %19 : vector<8x160xi1>, vector<8x160xf32>
    %21 = math.log %20 : vector<8x160xf32>
    %22 = arith.mulf %4, %21 : vector<8x160xf32>
    %cst_8 = arith.constant 0.000000e+00 : f32
    %23 = vector.broadcast %cst_8 : f32 to vector<8x160xf32>
    %24 = arith.select %16, %22, %23 : vector<8x160xi1>, vector<8x160xf32>
    %25 = arith.mulf %4, %14 : vector<8x160xf32>
    %26 = arith.subf %24, %25 : vector<8x160xf32>
    %cst_9 = arith.constant dense<0.000000e+00> : vector<8xf32>
    %27 = vector.multi_reduction <add>, %26, %cst_9 [1] : vector<8x160xf32> to vector<8xf32>
    %28 = vector.shape_cast %27 : vector<8xf32> to vector<8x1xf32>
    %c8_i32 = arith.constant 8 : i32
    %29 = arith.muli %arg0, %c8_i32 : i32
    %30 = tpu.iota {dimensions = array<i32: 0>} : vector<8x1xi32>
    %31 = vector.broadcast %29 : i32 to vector<8x1xi32>
    %32 = arith.addi %31, %30 : vector<8x1xi32>
    %c30_i32 = arith.constant 30 : i32
    %33 = vector.broadcast %c30_i32 : i32 to vector<8x1xi32>
    %34 = arith.cmpi slt, %32, %33 : vector<8x1xi32>
    %cst_10 = arith.constant 0.000000e+00 : f32
    %35 = vector.broadcast %cst_10 : f32 to vector<8x1xf32>
    %36 = arith.select %34, %28, %35 : vector<8x1xi1>, vector<8x1xf32>
    %c0_11 = arith.constant 0 : index
    %c0_12 = arith.constant 0 : index
    %37 = vector.load %arg3[%c0_11, %c0_12] : memref<1x1xf32, #tpu.memory_space<vmem>>, vector<1x1xf32>
    %cst_13 = arith.constant dense<0.000000e+00> : vector<1xf32>
    %38 = vector.multi_reduction <add>, %36, %cst_13 [0] : vector<8x1xf32> to vector<1xf32>
    %39 = vector.shape_cast %38 : vector<1xf32> to vector<1x1xf32>
    %40 = arith.addf %37, %39 : vector<1x1xf32>
    %c0_14 = arith.constant 0 : index
    %c0_15 = arith.constant 0 : index
    %41 = vector.load %arg3[%c0_14, %c0_15] : memref<1x1xf32, #tpu.memory_space<vmem>>, vector<1x1xf32>
    tpu.vector_store %arg3[%c0_14, %c0_15], %40 {strides = array<i32>} : memref<1x1xf32, #tpu.memory_space<vmem>>, vector<1x1xf32>,
    %c3_i32 = arith.constant 3 : i32
    %42 = arith.cmpi eq, %arg0, %c3_i32 : i32
    %43 = arith.extui %42 : i1 to i32
    %c0_i32_16 = arith.constant 0 : i32
    %44 = arith.cmpi ne, %43, %c0_i32_16 : i32
    scf.if %44 {
      %c0_17 = arith.constant 0 : index
      %c0_18 = arith.constant 0 : index
      %45 = vector.load %arg3[%c0_17, %c0_18] : memref<1x1xf32, #tpu.memory_space<vmem>>, vector<1x1xf32>
      %cst_19 = arith.constant 2.08333338E-4 : f32
      %46 = vector.broadcast %cst_19 : f32 to vector<1x1xf32>
      %47 = arith.mulf %45, %46 : vector<1x1xf32>
      %c0_20 = arith.constant 0 : index
      %c0_21 = arith.constant 0 : index
      %48 = vector.load %arg3[%c0_20, %c0_21] : memref<1x1xf32, #tpu.memory_space<vmem>>, vector<1x1xf32>
      tpu.vector_store %arg3[%c0_20, %c0_21], %47 {strides = array<i32>} : memref<1x1xf32, #tpu.memory_space<vmem>>, vector<1x1xf32>,
    } else {
    }
    return
  }
  func.func @transform_0(%arg0: i32) -> (i32, i32) {
    %c0_i32 = arith.constant 0 : i32
    %c0_i32_0 = arith.constant 0 : i32
    return %arg0, %c0_i32 : i32, i32
  }
  func.func @transform_1(%arg0: i32) -> (i32, i32) {
    %c0_i32 = arith.constant 0 : i32
    %c0_i32_0 = arith.constant 0 : i32
    return %arg0, %c0_i32 : i32, i32
  }
  func.func @transform_2(%arg0: i32) -> (i32, i32) {
    %c0_i32 = arith.constant 0 : i32
    %c0_i32_0 = arith.constant 0 : i32
    %c0_i32_1 = arith.constant 0 : i32
    return %c0_i32, %c0_i32_0 : i32, i32
  }
}

</mosaic_0001>

<llo_original>
// kernel: tpu_custom_call.1
$region0: #{tpu_custom_call.1}
  #allocation0 [shape = 'u32[]', space=smem, size = 0x4, offset = 0x4, fixed_abs, tag = 'smem constant byte address 0x4 - core index']
  #allocation1 [shape = 'u32[144,128]{1,0:T(1,128)}', space=vmem, size = 0x12000, scoped, tag = 'internal scratch']
  %s0 = inlined_call_operand.hbm [shape: f32[30,160], index: 0, kind: input, shape index: {}]
  %s1 = inlined_call_operand.hbm [shape: f32[30,160], index: 1, kind: input, shape index: {}]
  %s2 = inlined_call_operand.hbm [shape: f32[1,1], index: 2, kind: output, shape index: {}]
  %s3 = sld [smem:[#allocation0]]
  $region57: #{tpu_custom_call.1} parent=0
    _
  %s5 = ssub.s32 1, %s3
  %s6 = scalar_select 0, %s5, %s3
  $region1: #{tpu_custom_call.1} parent=0
    #allocation2 [shape = 'u8[16384]{0}', space=vmem, size = 0x4000, scoped, tag = 'input window, operand 0']
    #allocation3 [shape = 's32[2]{0}', space=sflag, size = 0x8, scoped, tag = 'scoped memory for tpu_custom_call.1']
    #allocation4 [shape = 's32[2]{0}', space=sflag, size = 0x8, scoped, tag = 'scoped memory for tpu_custom_call.1']
    #allocation5 [shape = 'u8[16384]{0}', space=vmem, size = 0x4000, scoped, tag = 'input window, operand 1']
    #allocation6 [shape = 's32[2]{0}', space=sflag, size = 0x8, scoped, tag = 'scoped memory for tpu_custom_call.1']
    #allocation7 [shape = 'u8[512]{0}', space=vmem, size = 0x400, scoped, tag = 'output window, operand 0, single buffered']
    %7 = vsyncpa [#allocation3], 0
    %s8 = scalar_lea.sflag [#allocation3], 1
    %9 = vsyncpa %s8, 0
    %10 = vsyncpa [#allocation6], 0
    %s11 = scalar_lea.sflag [#allocation6], 1
    %12 = vsyncpa %s11, 0
    %13 = vsyncpa [#allocation4], 0
    loop: start=0, step=1, limit=6
    $region2: #{tpu_custom_call.1} parent=1 // loop_pre_header
      _
    $region3: #{tpu_custom_call.1} parent=1 // loop_header
      %s15 = sphi 0, %s19
      %p16 = scmp.ge.s32.totalorder %s15, 6
      %s25 = sphi 0, %s27
      %s28 = sphi 0, %s25
      %s29 = sphi 0, %s28
      %s45 = sphi 0, %s29
      %s51 = sphi 0, %s53
      %s54 = sphi 0, %s51
      %s55 = sphi 0, %s54
      %s71 = sphi 0, %s55
      %s75 = sphi 0, %s75
      %s77 = sphi 0, %s75
      %s78 = sphi 0, %s77
      %s92 = sphi 0, %s78
    $region4: #{tpu_custom_call.1} parent=1 // loop_header_branch
      %18 = sbr.rel (%p16) target = $region8
    $region5: #{tpu_custom_call.1} parent=1 // loop_body
      %s20 = ssub.s32 %s15, 1
      %s21 = ssub.s32 %s15, 2
      %s22 = sadd.s32 %s15, 1
      %s23 = ssub.s32 %s15, %s22
      %p24 = scmp.eq.s32.totalorder %s23, 0
      %s26 = sadd.s32 %s25, 1
      %s27 = scalar_select %p24, %s25, %s26
      %p30 = pneg %p24
      %p31 = scmp.eq.s32.totalorder %s15, 3
      %p32 = por %p30, %p31
      %p33 = scmp.ne.s32.totalorder %s25, %s28
      %p34 = scmp.eq.s32.totalorder %s15, 0
      %p35 = por %p33, %p34
      %p36 = scmp.ne.s32.totalorder %s25, %s28
      %p37 = scmp.eq.s32.totalorder %s20, 3
      %p38 = por %p36, %p37
      %p39 = scmp.ne.s32.totalorder %s28, %s29
      %p40 = scmp.eq.s32.totalorder %s20, 0
      %p41 = por %p39, %p40
      %p42 = scmp.ne.s32.totalorder %s28, %s29
      %p43 = scmp.eq.s32.totalorder %s21, 3
      %p44 = por %p42, %p43
      %p46 = scmp.ne.s32.totalorder %s29, %s45
      %p47 = scmp.eq.s32.totalorder %s21, 0
      %p48 = por %p46, %p47
      %s49 = ssub.s32 %s15, %s22
      %p50 = scmp.eq.s32.totalorder %s49, 0
      %s52 = sadd.s32 %s51, 1
      %s53 = scalar_select %p50, %s51, %s52
      %p56 = pneg %p50
      %p57 = scmp.eq.s32.totalorder %s15, 3
      %p58 = por %p56, %p57
      %p59 = scmp.ne.s32.totalorder %s51, %s54
      %p60 = scmp.eq.s32.totalorder %s15, 0
      %p61 = por %p59, %p60
      %p62 = scmp.ne.s32.totalorder %s51, %s54
      %p63 = scmp.eq.s32.totalorder %s20, 3
      %p64 = por %p62, %p63
      %p65 = scmp.ne.s32.totalorder %s54, %s55
      %p66 = scmp.eq.s32.totalorder %s20, 0
      %p67 = por %p65, %p66
      %p68 = scmp.ne.s32.totalorder %s54, %s55
      %p69 = scmp.eq.s32.totalorder %s21, 3
      %p70 = por %p68, %p69
      %p72 = scmp.ne.s32.totalorder %s55, %s71
      %p73 = scmp.eq.s32.totalorder %s21, 0
      %p74 = por %p72, %p73
      %s76 = sadd.s32 %s75, 1
      %p79 = scmp.eq.s32.totalorder %s15, 3
      %p80 = scmp.ne.s32.totalorder %s75, %s77
      %p81 = scmp.eq.s32.totalorder %s15, 0
      %p82 = por %p80, %p81
      %p83 = scmp.ne.s32.totalorder %s75, %s77
      %p84 = scmp.eq.s32.totalorder %s20, 3
      %p85 = por %p83, %p84
      %p86 = scmp.ne.s32.totalorder %s77, %s78
      %p87 = scmp.eq.s32.totalorder %s20, 0
      %p88 = por %p86, %p87
      %p89 = scmp.ne.s32.totalorder %s77, %s78
      %p90 = scmp.eq.s32.totalorder %s21, 3
      %p91 = por %p89, %p90
      %p93 = scmp.ne.s32.totalorder %s78, %s92
      %p94 = scmp.eq.s32.totalorder %s21, 0
      %p95 = por %p93, %p94
      %p96 = scmp.le.s32.totalorder 1, %s15
      %p97 = scmp.lt.s32.totalorder %s15, 5
      %p98 = pnand %p96, %p97
      %p99 = pneg %p98
      // Predicated region
      $region9: #{tpu_custom_call.1} parent=5 // pred_check
        _
      $region10: #{tpu_custom_call.1} parent=5 // pred_check_branch
        %101 = sbr.rel (%p98) target = $region12
      $region11: #{tpu_custom_call.1} parent=5 // pred_region
        %s102 = ssub.s32 %s15, 1
      $region12: #{tpu_custom_call.1} parent=5 // pred_fallthru
        _
      %p103 = scmp.lt.s32.totalorder %s15, 4
      // Predicated region
      $region13: #{tpu_custom_call.1} parent=5 // pred_check
        %p104 = pneg %p103
      $region14: #{tpu_custom_call.1} parent=5 // pred_check_branch
        %106 = sbr.rel (%p104) target = $region16
      $region15: #{tpu_custom_call.1} parent=5 // pred_region
        // Predicated region
        $region17: #{tpu_custom_call.1} parent=15 // pred_check
          %p107 = pneg %p35
        $region18: #{tpu_custom_call.1} parent=15 // pred_check_branch
          %109 = sbr.rel (%p107) target = $region20
        $region19: #{tpu_custom_call.1} parent=15 // pred_region
          %s110 = sand.u32 %s25, 1
          %s111 = scalar_lea.sflag [#allocation3], %s110
          %s112 = sand.u32 %s25, 1
          %s113 = smul.addr %s112, 16
          %s114 = scalar_lea.vmem [#allocation2], %s113
          %s116 = ssub.s32 256, 256
          %117 = vsyncadd %s111, %s116
          %s118 = smul.addr %s15, 2
          %s119 = smul.addr %s118, 128
          %s120 = scalar_lea.hbm %s0, %s119
          %s122 = sshll.u32 %s114, 4
          %s123 = int_to_ptr.vmem [resolvable:$true] %s122
          %125 = dma.hbm_to_vmem [thread:$0]  %s120, 256, %s123, %s111
        $region20: #{tpu_custom_call.1} parent=15 // pred_fallthru
          _
        // Predicated region
        $region21: #{tpu_custom_call.1} parent=15 // pred_check
          %p126 = pneg %p61
        $region22: #{tpu_custom_call.1} parent=15 // pred_check_branch
          %128 = sbr.rel (%p126) target = $region24
        $region23: #{tpu_custom_call.1} parent=15 // pred_region
          %s129 = sand.u32 %s51, 1
          %s130 = scalar_lea.sflag [#allocation6], %s129
          %s131 = sand.u32 %s51, 1
          %s132 = smul.addr %s131, 16
          %s133 = scalar_lea.vmem [#allocation5], %s132
          %s135 = ssub.s32 256, 256
          %136 = vsyncadd %s130, %s135
          %s137 = smul.addr %s15, 2
          %s138 = smul.addr %s137, 128
          %s139 = scalar_lea.hbm %s1, %s138
          %s141 = sshll.u32 %s133, 4
          %s142 = int_to_ptr.vmem [resolvable:$true] %s141
          %144 = dma.hbm_to_vmem [thread:$0]  %s139, 256, %s142, %s130
        $region24: #{tpu_custom_call.1} parent=15 // pred_fallthru
          _
      $region16: #{tpu_custom_call.1} parent=5 // pred_fallthru
        _
      %p145 = scmp.le.s32.totalorder 1, %s15
      %p146 = scmp.lt.s32.totalorder %s15, 5
      %p147 = pnand %p145, %p146
      %p148 = pneg %p147
      // Predicated region
      $region25: #{tpu_custom_call.1} parent=5 // pred_check
        _
      $region26: #{tpu_custom_call.1} parent=5 // pred_check_branch
        %150 = sbr.rel (%p147) target = $region28
      $region27: #{tpu_custom_call.1} parent=5 // pred_region
        %s151 = ssub.s32 %s15, 1
        %s152 = sand.u32 %s28, 1
        %s153 = scalar_lea.sflag [#allocation3], %s152
        %s154 = sand.u32 %s28, 1
        %s155 = smul.addr %s154, 16
        %s156 = scalar_lea.vmem [#allocation2], %s155
        // Predicated region
        $region29: #{tpu_custom_call.1} parent=27 // pred_check
          %p157 = pneg %p41
        $region30: #{tpu_custom_call.1} parent=27 // pred_check_branch
          %159 = sbr.rel (%p157) target = $region32
        $region31: #{tpu_custom_call.1} parent=27 // pred_region
          %160 = dma.done %s153, 256
        $region32: #{tpu_custom_call.1} parent=27 // pred_fallthru
          _
        %s161 = sand.u32 %s54, 1
        %s162 = scalar_lea.sflag [#allocation6], %s161
        %s163 = sand.u32 %s54, 1
        %s164 = smul.addr %s163, 16
        %s165 = scalar_lea.vmem [#allocation5], %s164
        // Predicated region
        $region33: #{tpu_custom_call.1} parent=27 // pred_check
          %p166 = pneg %p67
        $region34: #{tpu_custom_call.1} parent=27 // pred_check_branch
          %168 = sbr.rel (%p166) target = $region36
        $region35: #{tpu_custom_call.1} parent=27 // pred_region
          %169 = dma.done %s162, 256
        $region36: #{tpu_custom_call.1} parent=27 // pred_fallthru
          _
        %s170 = sand.u32 %s28, 1
        %s171 = scalar_lea.sflag [#allocation3], %s170
        %s172 = sand.u32 %s28, 1
        %s173 = smul.addr %s172, 16
        %s174 = scalar_lea.vmem [#allocation2], %s173
        %p175 = pneg %p41
        %p176 = pneg %p38
        %s177 = sand.u32 %s54, 1
        %s178 = scalar_lea.sflag [#allocation6], %s177
        %s179 = sand.u32 %s54, 1
        %s180 = smul.addr %s179, 16
        %s181 = scalar_lea.vmem [#allocation5], %s180
        %p182 = pneg %p67
        %p183 = pneg %p64
        %p184 = pneg %p88
        %p185 = pneg %p85
        %p186 = scmp.eq.s32.totalorder %s20, 0
        // Predicated region
        $region37: #{tpu_custom_call.1} parent=27 // pred_check
          %p187 = pneg %p186
        $region38: #{tpu_custom_call.1} parent=27 // pred_check_branch
          %189 = sbr.rel (%p187) target = $region40
        $region39: #{tpu_custom_call.1} parent=27 // pred_region
          %vm190 = vcmask 0
          %191 = vst.msk [vmem:[#allocation7] sm:$0x1] %vm190, 0.0
        $region40: #{tpu_custom_call.1} parent=27 // pred_fallthru
          _
        %v192 = vld [vmem:[%s156] sm:$0xff]
        %v193 = vld [vmem:[%s156 + $0x8] sm:$0xff]
        %v194 = vld [vmem:[%s165] sm:$0xff]
        %v195 = vld [vmem:[%s165 + $0x8] sm:$0xff]
        %vm196 = vcmask 261120
        %v197 = vsel %vm196, %v193, -inf
        %v198 = vmax.f32 %v192, %v197
        %199 = vmax.xlane.f32.xlu0 %v198
        %v200 = vpop.xlane.xlu0 %199
        %v201 = vsub.f32 %v192, %v200
        %v202 = vsub.f32 %v193, %v200
        %v203 = vmul.f32 %v201, 1.442695
        %v204 = vpow.pop %v203
        %v205 = vmul.f32 %v202, 1.442695
        %v206 = vpow.pop %v205
        %v207 = vsel %vm196, %v206, 0.0
        %v208 = vadd.f32 %v204, %v207
        %209 = vadd.xlane.f32.xlu0 %v208
        %v210 = vpop.xlane.xlu0 %209
        %v211 = vlog2.pop %v210
        %v212 = vmul.f32 %v211, 0.6931472
        %v213 = vsub.f32 %v201, %v212
        %v214 = vsub.f32 %v202, %v212
        %vm215 = vcmp.gt.f32.partialorder %v194, 0.0
        %vm216 = vcmp.gt.f32.partialorder %v195, 0.0
        %v217 = vsel %vm215, %v194, 1.0
        %v218 = vsel %vm216, %v195, 1.0
        %v219 = vlog2.pop %v217
        %v220 = vmul.f32 %v219, 0.6931472
        %v221 = vlog2.pop %v218
        %v222 = vmul.f32 %v221, 0.6931472
        %v223 = vmul.f32 %v194, %v220
        %v224 = vmul.f32 %v195, %v222
        %v225 = vsel %vm215, %v223, 0.0
        %v226 = vsel %vm216, %v224, 0.0
        %v227 = vmul.f32 %v194, %v213
        %v228 = vmul.f32 %v195, %v214
        %v229 = vsub.f32 %v225, %v227
        %v230 = vsub.f32 %v226, %v228
        %v231 = vsel %vm196, %v230, 0.0
        %v232 = vadd.f32 %v229, %v231
        %233 = vadd.xlane.f32.xlu0 %v232
        %v234 = vpop.xlane.xlu0 %233
        %s235 = smul.u32 %s20, 8
        %v236 = vlaneseq
        %v237 = vshrl.u32 %v236, 7
        %v238 = vstv %s235
        %v239 = vadd.s32 %v238, %v237
        %vm240 = vcmp.lt.s32.totalorder %v239, 30
        %v241 = vsel %vm240, %v234, 0.0
        %v242 = vld [vmem:[#allocation7] sm:$0x1]
        %v243 = vrot.slane %v241, 4
        %v244 = vadd.f32 %v241, %v243
        %v245 = vrot.slane %v244, 2
        %v246 = vadd.f32 %v244, %v245
        %v247 = vrot.slane %v246, 1
        %v248 = vadd.f32 %v246, %v247
        %v249 = vadd.f32 %v242, %v248
        %vm250 = vcmask 0
        %251 = vst.msk [vmem:[#allocation7] sm:$0x1] %vm250, %v249
        %p252 = scmp.eq.s32.totalorder %s20, 3
        // Predicated region
        $region41: #{tpu_custom_call.1} parent=27 // pred_check
          %p253 = pneg %p252
        $region42: #{tpu_custom_call.1} parent=27 // pred_check_branch
          %255 = sbr.rel (%p253) target = $region44
        $region43: #{tpu_custom_call.1} parent=27 // pred_region
          %v256 = vld [vmem:[#allocation7] sm:$0x1]
          %v257 = vmul.f32 %v256, 0.00020833334
          %258 = vst.msk [vmem:[#allocation7] sm:$0x1] %vm250, %v257
        $region44: #{tpu_custom_call.1} parent=27 // pred_fallthru
          _
        // Predicated region
        $region45: #{tpu_custom_call.1} parent=27 // pred_check
          %p259 = pneg %p85
        $region46: #{tpu_custom_call.1} parent=27 // pred_check_branch
          %261 = sbr.rel (%p259) target = $region48
        $region47: #{tpu_custom_call.1} parent=27 // pred_region
          %s263 = ssub.s32 16, 16
          %264 = vsyncadd [#allocation4], %s263
          %s266 = sshll.u32 [#allocation7], 4
          %s267 = int_to_ptr.vmem [resolvable:$true] %s266
          %269 = dma.vmem_to_hbm [thread:$0]  %s267, 16, %s2, [#allocation4]
        $region48: #{tpu_custom_call.1} parent=27 // pred_fallthru
          _
        // Predicated region
        $region49: #{tpu_custom_call.1} parent=27 // pred_check
          %p270 = pneg %p85
        $region50: #{tpu_custom_call.1} parent=27 // pred_check_branch
          %272 = sbr.rel (%p270) target = $region52
        $region51: #{tpu_custom_call.1} parent=27 // pred_region
          %273 = dma.done [#allocation4], 16
        $region52: #{tpu_custom_call.1} parent=27 // pred_fallthru
          _
      $region28: #{tpu_custom_call.1} parent=5 // pred_fallthru
        _
      %p274 = scmp.le.s32.totalorder 2, %s15
      // Predicated region
      $region53: #{tpu_custom_call.1} parent=5 // pred_check
        %p275 = pneg %p274
      $region54: #{tpu_custom_call.1} parent=5 // pred_check_branch
        %277 = sbr.rel (%p275) target = $region56
      $region55: #{tpu_custom_call.1} parent=5 // pred_region
        %s278 = ssub.s32 %s15, 2
      $region56: #{tpu_custom_call.1} parent=5 // pred_fallthru
        _
    $region6: #{tpu_custom_call.1} parent=1 // loop_footer
      %s19 = sadd.s32 1, %s15
    $region7: #{tpu_custom_call.1} parent=1 // loop_footer_branch
      %14 = sbr.rel target = $region3
    $region8: #{tpu_custom_call.1} parent=1 // loop_exit
      _
    %279 = vsyncpa [#allocation3], 1
    %s280 = scalar_lea.sflag [#allocation3], 1
    %281 = vsyncpa %s280, 1
    %282 = vsyncpa [#allocation6], 1
    %s283 = scalar_lea.sflag [#allocation6], 1
    %284 = vsyncpa %s283, 1
    %285 = vsyncpa [#allocation4], 1
    %s286 = scalar_lea.sflag [#allocation4], 1
    %287 = vsyncpa %s286, 1

</llo_original>
